<compile_context>
chip_gen: v6e
topology: v6e:2x2x1
jax: 0.10.0
libtpu: 0.0.40
codegen_flags: <defaults>
</compile_context>

<pallas_src>
import functools

import jax
import jax.numpy as jnp
from jax.experimental import pallas as pl
from jax.experimental.pallas import tpu as pltpu


def _fm_kernel(emb_ref, lin_ref, bias_ref, out_ref, *, num_fields, embed_dim,
               apply_sigmoid):
    """emb_ref: (TB, F*D) VMEM; lin_ref: (TB, F) VMEM; bias_ref: (1,1) f32 SMEM;
    out_ref: (TB, 1) f32 VMEM."""
    e = emb_ref[...].astype(jnp.float32)                       # (TB, F*D)
    fd = num_fields * embed_dim

    # ---- second-order FM term: 0.5 * sum_d [(sum_f e)^2 - sum_f e^2] --------
    if num_fields & (num_fields - 1) == 0:
        # Power-of-two field count: per-dimension field sum via an XLU
        # roll-tree on the lane-dense layout (lane index = f*D + d). After the
        # tree, lanes [0, D) hold sum_f e[:, f, d]. Rolls use the XLU slot,
        # adds use the VPU slot, and no 3-D relayout is materialized.
        s = e
        shift = fd // 2
        while shift >= embed_dim:
            s = s + pltpu.roll(s, shift, axis=1)
            shift //= 2
        lane = jax.lax.broadcasted_iota(jnp.int32, s.shape, 1)
        sq_of_sum = jnp.sum(jnp.where(lane < embed_dim, s * s, 0.0),
                            axis=1, keepdims=True)             # (TB, 1)
    else:
        # Fallback for non-power-of-two field counts (in-kernel relayout).
        sum_f = jnp.sum(e.reshape(e.shape[0], num_fields, embed_dim), axis=1)
        sq_of_sum = jnp.sum(sum_f * sum_f, axis=1, keepdims=True)

    sum_of_sq = jnp.sum(e * e, axis=1, keepdims=True)           # (TB, 1)
    fm = 0.5 * (sq_of_sum - sum_of_sq)                          # (TB, 1)

    # ---- first-order linear term + global bias ------------------------------
    linear = (jnp.sum(lin_ref[...].astype(jnp.float32), axis=1, keepdims=True)
              + bias_ref[0, 0])                                 # (TB, 1)

    logit = linear + fm
    if apply_sigmoid:
        # Stable sigmoid: exp of a non-positive argument (EUP), no inf path.
        z = jnp.exp(-jnp.abs(logit))
        out_ref[...] = jnp.where(logit >= 0.0, 1.0 / (1.0 + z), z / (1.0 + z))
    else:
        out_ref[...] = logit


def fm_forward(x, embed_table, lin_table, bias, offsets, *,
               sigmoid_output=True, block_rows=2048):
    """x: int32 (B, F) per-field categorical indices. Returns (B,) float32."""
    B, F = x.shape
    D = embed_table.shape[1]
    FD = F * D

    # TODO(synk): the data-dependent embedding-row gather stays in JAX glue. A
    # fused in-kernel gather (scalar-prefetch idx + one tiny DMA per (row,
    # field)) was evaluated, but B*F sub-100-byte DMA descriptors are slower on
    # the TensorCore than XLA's gather; efficient fusion needs SparseCore /
    # coalesced lookups. Instead the gathered intermediate is kept lane-dense
    # and in bf16 to minimise the extra HBM traffic.
    idx = x + offsets[None, :]                                  # (B, F) global rows
    emb = embed_table[idx].reshape(B, FD)                       # (B, F*D), table dtype
    lin = lin_table[idx][..., 0]                                # (B, F),   table dtype

    # Batch tiling: TB rows per grid step; pad B up to a multiple of TB.
    TB = block_rows if B >= block_rows else B
    Bp = pl.cdiv(B, TB) * TB
    if Bp != B:
        emb = jnp.pad(emb, ((0, Bp - B), (0, 0)))
        lin = jnp.pad(lin, ((0, Bp - B), (0, 0)))

    bias2d = jnp.asarray(bias, jnp.float32).reshape(1, 1)

    itemsize = jnp.dtype(emb.dtype).itemsize
    cost = pl.CostEstimate(
        flops=Bp * (5 * FD + 2 * F + 10),
        transcendentals=Bp,
        bytes_accessed=Bp * ((FD + F) * itemsize + 4),
    )

    kernel = functools.partial(_fm_kernel, num_fields=F, embed_dim=D,
                               apply_sigmoid=sigmoid_output)

    out = pl.pallas_call(
        kernel,
        out_shape=jax.ShapeDtypeStruct((Bp, 1), jnp.float32),
        grid=(Bp // TB,),
        in_specs=[
            pl.BlockSpec((TB, FD), lambda i: (i, 0)),             # embeddings
            pl.BlockSpec((TB, F), lambda i: (i, 0)),              # linear terms
            pl.BlockSpec(memory_space=pltpu.MemorySpace.SMEM),    # bias scalar
        ],
        out_specs=pl.BlockSpec((TB, 1), lambda i: (i, 0)),
        compiler_params=pltpu.CompilerParams(
            dimension_semantics=("parallel",),
        ),
        cost_estimate=cost,
    )(emb, lin, bias2d)

    return out[:B, 0]                                            # (B,)


if __name__ == "__main__":
    key = jax.random.PRNGKey(0)

    # Small config consistent with a (batch, num_fields) Long input.
    field_dims = (4, 6, 8, 5, 3, 7, 2, 9)        # F = 8 fields
    embed_dim = 16                                # F * D = 128 -> one full lane row
    B = 2
    F = len(field_dims)
    total = sum(field_dims)

    k_emb, k_lin, k_x = jax.random.split(key, 3)

    # Parameters stored in bf16 (halves HBM traffic); all math is f32 in-kernel.
    embed_table = (0.1 * jax.random.normal(k_emb, (total, embed_dim),
                                           jnp.float32)).astype(jnp.bfloat16)
    lin_table = (0.1 * jax.random.normal(k_lin, (total, 1),
                                         jnp.float32)).astype(jnp.bfloat16)
    bias = jnp.zeros((1,), jnp.float32)

    # Field offsets (exclusive cumsum of field_dims).
    offs = [0]
    for d in field_dims[:-1]:
        offs.append(offs[-1] + d)
    offsets = jnp.array(offs, jnp.int32)

    # Input: per-field categorical index in [0, field_dims[f]).
    xs = []
    for k, d in zip(jax.random.split(k_x, F), field_dims):
        xs.append(jax.random.randint(k, (B,), 0, d, dtype=jnp.int32))
    x = jnp.stack(xs, axis=1)                     # (B, F) int32

    fwd = jax.jit(fm_forward, static_argnames=("sigmoid_output", "block_rows"))
    out_sig = jax.block_until_ready(fwd(x, embed_table, lin_table, bias, offsets))
    out_logit = jax.block_until_ready(
        fwd(x, embed_table, lin_table, bias, offsets, sigmoid_output=False))

    # Pure-JAX reference (same bf16 parameters, f32 math).
    idx = x + offsets[None, :]
    emb_r = embed_table[idx].astype(jnp.float32)                 # (B, F, D)
    lin_r = lin_table[idx][..., 0].astype(jnp.float32)           # (B, F)
    logit_r = (jnp.sum(lin_r, axis=1, keepdims=True) + bias
               + 0.5 * jnp.sum(jnp.sum(emb_r, 1) ** 2 - jnp.sum(emb_r ** 2, 1),
                               axis=1, keepdims=True))[:, 0]
    ref_sig = jax.nn.sigmoid(logit_r)

    assert out_sig.shape == (B,) and out_logit.shape == (B,)
    assert jnp.allclose(out_logit, logit_r, atol=1e-5, rtol=1e-5)
    assert jnp.allclose(out_sig, ref_sig, atol=1e-5, rtol=1e-5)

    print("KERNEL_OK")
</pallas_src>

<mosaic_0001>
module attributes {stable_mosaic.version = 11 : i64} {
  func.func @_fm_kernel(%arg0: i32, %arg1: memref<2x128xbf16, #tpu.memory_space<vmem>>, %arg2: memref<2x8xbf16, #tpu.memory_space<vmem>>, %arg3: memref<1x1xf32, #tpu.memory_space<smem>>, %arg4: memref<2x1xf32, #tpu.memory_space<vmem>>) attributes {dimension_semantics = [#tpu.dimension_semantics<parallel>], iteration_bounds = array<i64: 1>, scalar_prefetch = 0 : i64, scratch_operands = 0 : i64, tpu.core_type = #tpu.core_type<tc>, window_params = [{transform_indices = @transform_0, window_bounds = array<i64: 2, 128>}, {transform_indices = @transform_1, window_bounds = array<i64: 2, 8>}, {transform_indices = @transform_2, window_bounds = array<i64: 1, 1>}, {transform_indices = @transform_3, window_bounds = array<i64: 2, 1>}]} {
    %c0 = arith.constant 0 : index
    %c0_0 = arith.constant 0 : index
    %0 = vector.load %arg1[%c0, %c0_0] : memref<2x128xbf16, #tpu.memory_space<vmem>>, vector<2x128xbf16>
    %1 = arith.extf %0 : vector<2x128xbf16> to vector<2x128xf32>
    %c64_i32 = arith.constant 64 : i32
    %2 = tpu.dynamic_rotate %1 by %c64_i32 dim 1 : vector<2x128xf32>, i32 -> vector<2x128xf32>
    %3 = arith.addf %1, %2 : vector<2x128xf32>
    %c32_i32 = arith.constant 32 : i32
    %4 = tpu.dynamic_rotate %3 by %c32_i32 dim 1 : vector<2x128xf32>, i32 -> vector<2x128xf32>
    %5 = arith.addf %3, %4 : vector<2x128xf32>
    %c16_i32 = arith.constant 16 : i32
    %6 = tpu.dynamic_rotate %5 by %c16_i32 dim 1 : vector<2x128xf32>, i32 -> vector<2x128xf32>
    %7 = arith.addf %5, %6 : vector<2x128xf32>
    %8 = tpu.iota {dimensions = array<i32: 1>} : vector<2x128xi32>
    %c16_i32_1 = arith.constant 16 : i32
    %9 = vector.broadcast %c16_i32_1 : i32 to vector<2x128xi32>
    %10 = arith.cmpi slt, %8, %9 : vector<2x128xi32>
    %11 = arith.mulf %7, %7 : vector<2x128xf32>
    %cst = arith.constant 0.000000e+00 : f32
    %12 = vector.broadcast %cst : f32 to vector<2x128xf32>
    %13 = arith.select %10, %11, %12 : vector<2x128xi1>, vector<2x128xf32>
    %cst_2 = arith.constant dense<0.000000e+00> : vector<2xf32>
    %14 = vector.multi_reduction <add>, %13, %cst_2 [1] : vector<2x128xf32> to vector<2xf32>
    %15 = vector.shape_cast %14 : vector<2xf32> to vector<2x1xf32>
    %16 = arith.mulf %1, %1 : vector<2x128xf32>
    %cst_3 = arith.constant dense<0.000000e+00> : vector<2xf32>
    %17 = vector.multi_reduction <add>, %16, %cst_3 [1] : vector<2x128xf32> to vector<2xf32>
    %18 = vector.shape_cast %17 : vector<2xf32> to vector<2x1xf32>
    %19 = arith.subf %15, %18 : vector<2x1xf32>
    %cst_4 = arith.constant 5.000000e-01 : f32
    %20 = vector.broadcast %cst_4 : f32 to vector<2x1xf32>
    %21 = arith.mulf %20, %19 : vector<2x1xf32>
    %c0_5 = arith.constant 0 : index
    %c0_6 = arith.constant 0 : index
    %22 = vector.load %arg2[%c0_5, %c0_6] : memref<2x8xbf16, #tpu.memory_space<vmem>>, vector<2x8xbf16>
    %23 = arith.extf %22 : vector<2x8xbf16> to vector<2x8xf32>
    %cst_7 = arith.constant dense<0.000000e+00> : vector<2xf32>
    %24 = vector.multi_reduction <add>, %23, %cst_7 [1] : vector<2x8xf32> to vector<2xf32>
    %25 = vector.shape_cast %24 : vector<2xf32> to vector<2x1xf32>
    %c0_8 = arith.constant 0 : index
    %c0_9 = arith.constant 0 : index
    %26 = memref.load %arg3[%c0_8, %c0_9] : memref<1x1xf32, #tpu.memory_space<smem>>
    %27 = vector.broadcast %26 : f32 to vector<2x1xf32>
    %28 = arith.addf %25, %27 : vector<2x1xf32>
    %29 = arith.addf %28, %21 : vector<2x1xf32>
    %30 = math.absf %29 : vector<2x1xf32>
    %cst_10 = arith.constant 0.000000e+00 : f32
    %31 = vector.broadcast %cst_10 : f32 to vector<2x1xf32>
    %32 = arith.subf %31, %30 : vector<2x1xf32>
    %33 = math.exp %32 : vector<2x1xf32>
    %cst_11 = arith.constant 0.000000e+00 : f32
    %34 = vector.broadcast %cst_11 : f32 to vector<2x1xf32>
    %35 = arith.cmpf oge, %29, %34 : vector<2x1xf32>
    %cst_12 = arith.constant 1.000000e+00 : f32
    %36 = vector.broadcast %cst_12 : f32 to vector<2x1xf32>
    %37 = arith.addf %36, %33 : vector<2x1xf32>
    %cst_13 = arith.constant 1.000000e+00 : f32
    %38 = vector.broadcast %cst_13 : f32 to vector<2x1xf32>
    %39 = arith.divf %38, %37 : vector<2x1xf32>
    %cst_14 = arith.constant 1.000000e+00 : f32
    %40 = vector.broadcast %cst_14 : f32 to vector<2x1xf32>
    %41 = arith.addf %40, %33 : vector<2x1xf32>
    %42 = arith.divf %33, %41 : vector<2x1xf32>
    %43 = arith.select %35, %39, %42 : vector<2x1xi1>, vector<2x1xf32>
    %c0_15 = arith.constant 0 : index
    %c0_16 = arith.constant 0 : index
    %44 = vector.load %arg4[%c0_15, %c0_16] : memref<2x1xf32, #tpu.memory_space<vmem>>, vector<2x1xf32>
    tpu.vector_store %arg4[%c0_15, %c0_16], %43 {strides = array<i32>} : memref<2x1xf32, #tpu.memory_space<vmem>>, vector<2x1xf32>,
    return
  }
  func.func @transform_0(%arg0: i32) -> (i32, i32) {
    %c0_i32 = arith.constant 0 : i32
    %c0_i32_0 = arith.constant 0 : i32
    return %arg0, %c0_i32 : i32, i32
  }
  func.func @transform_1(%arg0: i32) -> (i32, i32) {
    %c0_i32 = arith.constant 0 : i32
    %c0_i32_0 = arith.constant 0 : i32
    return %arg0, %c0_i32 : i32, i32
  }
  func.func @transform_2(%arg0: i32) -> (i32, i32) {
    %c0_i32 = arith.constant 0 : i32
    %c0_i32_0 = arith.constant 0 : i32
    %c0_i32_1 = arith.constant 0 : i32
    return %c0_i32, %c0_i32_0 : i32, i32
  }
  func.func @transform_3(%arg0: i32) -> (i32, i32) {
    %c0_i32 = arith.constant 0 : i32
    %c0_i32_0 = arith.constant 0 : i32
    return %arg0, %c0_i32 : i32, i32
  }
}

</mosaic_0001>

<llo_original>
// kernel: squeeze.2
$region0: #{squeeze.2}
  %s0 = inlined_call_operand.vmem [shape: bf16[16], index: 0, kind: input, shape index: {}]
  %s1 = inlined_call_operand.vmem [shape: bf16[2,8], index: 1, kind: output, shape index: {}]
  $region1: #{squeeze.2} parent=0
    #allocation0 [shape = 'u8[4096]{0}', space=vmem, size = 0x1000, scoped, tag = 'scoped mem for output reshape']
    #allocation1 [shape = 'u8[4096]{0}', space=vmem, size = 0x1000, scoped, tag = 'scoped mem for input reshape']
    %s3 = smul.u32 1, 2
    %s4 = sshll.u32 1, %s3
    %s5 = ssub.s32 %s4, 1
    %s6 = sshrl.u32 %s5, 1
    %s7 = sor.u32 %s5, %s6
    %s8 = sand.u32 %s7, 85
    %s9 = sshrl.u32 %s8, 1
    %s10 = sor.u32 %s8, %s9
    %s11 = sand.u32 51, %s10
    %s12 = sshrl.u32 %s11, 2
    %s13 = sor.u32 %s11, %s12
    %s14 = sand.u32 15, %s13
    %v15 = vld [vmem:[%s0] sm:%s14]
    %v16 = vunpack.c.l.bf16 %v15
    %v17 = vunpack.c.h.bf16 %v15
    %18 = vst [vmem:[#allocation1] sm:%s5] %v16
    %v19 = vld [vmem:[#allocation1] sm:$0x1]
    %vm20 = vcmask 64512
    %21 = vst.msk [vmem:[#allocation0] sm:$0x1] %vm20, %v19
    %v22 = vld [vmem:[#allocation1] sm:$0x1]
    %23 = vrot.lane.b32.xlu0 %v22, 120
    %v24 = vpop.permute.xlu0 %23
    %vm25 = vcmask 64512
    %s26 = scalar_lea.vmem [#allocation0], 1
    %27 = vst.msk [vmem:[%s26] sm:$0x1] %vm25, %v24
    %s29 = smul.u32 1, 2
    %s30 = sshll.u32 1, %s29
    %s31 = ssub.s32 %s30, 1
    %s32 = sshrl.u32 %s29, 1
    %v33 = vld [vmem:[#allocation0] sm:%s31]
    %v34 = vpack.c.bf16 0.0, %v33
    %s35 = sshll.u32 1, %s32
    %s36 = ssub.s32 %s35, 1
    %37 = vst [vmem:[%s1] sm:%s36] %v34

// kernel: fm_forward.1
$region0: #{fm_forward.1}
  #allocation0 [shape = 'u32[]', space=smem, size = 0x4, offset = 0x4, fixed_abs, tag = 'smem constant byte address 0x4 - core index']
  #allocation1 [shape = 'u32[144,128]{1,0:T(1,128)}', space=vmem, size = 0x12000, scoped, tag = 'internal scratch']
  #allocation2 [shape = 'f32[1,1]{1,0:T(1,128)S(6)}', space=smem, size = 0x200, scoped, tag = 'scoped memory for fm_forward.1']
  %s0 = inlined_call_operand.vmem [shape: bf16[2,128], index: 0, kind: input, shape index: {}]
  %s1 = inlined_call_operand.vmem [shape: bf16[2,8], index: 1, kind: input, shape index: {}]
  %s2 = inlined_call_operand.<no memory space> [shape: f32[1,1], index: 2, kind: input, shape index: {}]
  %s3 = inlined_call_operand.vmem [shape: f32[2,1], index: 3, kind: output, shape index: {}]
  %s4 = sld [smem:[#allocation0]]
  $region22: #{fm_forward.1} parent=0
    _
  %s6 = ssub.s32 1, %s4
  %s7 = scalar_select 0, %s6, %s4
  %8 = sst [smem:[#allocation2]] %s2
  // Predicated region
  $region2: #{fm_forward.1} parent=0 // pred_check
    _
  $region3: #{fm_forward.1} parent=0 // pred_check_branch
    %10 = sbr.rel (0) target = $region5
  $region4: #{fm_forward.1} parent=0 // pred_region
    _
  $region5: #{fm_forward.1} parent=0 // pred_fallthru
    _
  // Predicated region
  $region6: #{fm_forward.1} parent=0 // pred_check
    _
  $region7: #{fm_forward.1} parent=0 // pred_check_branch
    %12 = sbr.rel (0) target = $region9
  $region8: #{fm_forward.1} parent=0 // pred_region
    _
  $region9: #{fm_forward.1} parent=0 // pred_fallthru
    _
  // Predicated region
  $region10: #{fm_forward.1} parent=0 // pred_check
    _
  $region11: #{fm_forward.1} parent=0 // pred_check_branch
    %14 = sbr.rel (0) target = $region13
  $region12: #{fm_forward.1} parent=0 // pred_region
    _
  $region13: #{fm_forward.1} parent=0 // pred_fallthru
    _
  %v15 = vld [vmem:[%s0] sm:$0x1]
  %v16 = vunpack.c.l.bf16 %v15
  %17 = vrot.lane.b32.xlu0 %v16, 64
  %v18 = vpop.permute.xlu0 %17
  %v19 = vadd.f32 %v16, %v18
  %20 = vrot.lane.b32.xlu0 %v19, 32
  %v21 = vpop.permute.xlu0 %20
  %v22 = vadd.f32 %v19, %v21
  %23 = vrot.lane.b32.xlu0 %v22, 16
  %v24 = vpop.permute.xlu0 %23
  %v25 = vadd.f32 %v22, %v24
  %v26 = vlaneseq
  %v27 = vand.u32 %v26, 127
  %vm28 = vcmp.lt.s32.totalorder %v27, 16
  %v29 = vmul.f32 %v25, %v25
  %v30 = vsel %vm28, %v29, 0.0
  %vm31 = vcmask 1041408
  %v32 = vsel %vm31, %v30, 0.0
  %33 = vadd.xlane.f32.xlu0 %v32
  %v34 = vpop.xlane.xlu0 %33
  %v35 = vmul.f32 %v16, %v16
  %v36 = vsel %vm31, %v35, 0.0
  %37 = vadd.xlane.f32.xlu0 %v36
  %v38 = vpop.xlane.xlu0 %37
  %v39 = vsub.f32 %v34, %v38
  %v40 = vmul.f32 %v39, 0.5
  %v41 = vld [vmem:[%s1] sm:$0x1]
  %v42 = vunpack.c.l.bf16 %v41
  %vm43 = vcmask 58368
  %v44 = vsel %vm43, %v42, 0.0
  %45 = vadd.xlane.f32.xlu0 %v44
  %v46 = vpop.xlane.xlu0 %45
  %s47 = sld [smem:[#allocation2]]
  %v48 = vstv %s47
  %v49 = vadd.f32 %v46, %v48
  %v50 = vadd.f32 %v49, %v40
  %v51 = vand.u32 2147483647, %v50
  %v52 = vsub.f32 0.0, %v51
  %v53 = vmul.f32 %v52, 1.442695
  %v54 = vpow.pop %v53
  %vm55 = vcmp.ge.f32.partialorder %v50, 0.0
  %v56 = vadd.f32 %v54, 1.0
  %v57 = vrcp.pop %v56
  %v58 = vmul.f32 1.0, %v57
  %v59 = vmul.f32 %v54, %v57
  %v60 = vsel %vm55, %v58, %v59
  %vm61 = vcmask 1024
  %62 = vst.msk [vmem:[%s3] sm:$0x3] %vm61, %v60
  // Predicated region
  $region14: #{fm_forward.1} parent=0 // pred_check
    _
  $region15: #{fm_forward.1} parent=0 // pred_check_branch
    %64 = sbr.rel (0) target = $region17
  $region16: #{fm_forward.1} parent=0 // pred_region
    _
  $region17: #{fm_forward.1} parent=0 // pred_fallthru
    _
  // Predicated region
  $region18: #{fm_forward.1} parent=0 // pred_check
    _
  $region19: #{fm_forward.1} parent=0 // pred_check_branch
    %66 = sbr.rel (0) target = $region21
  $region20: #{fm_forward.1} parent=0 // pred_region
    _
  $region21: #{fm_forward.1} parent=0 // pred_fallthru
    _

</llo_original>
